<compile_context>
chip_gen: v5e
topology: v5e:2x2
jax: 0.10.0
libtpu: 0.0.40
codegen_flags: <defaults>
</compile_context>

<pallas_src>
import functools

import jax
import jax.numpy as jnp
from jax.experimental import pallas as pl
from jax.experimental.pallas import tpu as pltpu

EPS_IN = 1e-5   # torch.nn.InstanceNorm1d default eps
KTH = 10        # cc_kth_p hardcodes kth = 10
LANE = 128


def _round_up(n, m):
    return ((n + m - 1) // m) * m


def _intra_adr_kernel(x_ref, w_ref, b_ref, topk_ref, branch_ref, *,
                      bb, l_valid, kth):
    # x_ref:      (bb, 2*C_in, Lp)  stacked & shifted input (zero lane padding)
    # w_ref:      (C_out, 2*C_in)   stacked ConvTranspose1d weight (transposed)
    # b_ref:      (C_out, 1)        bias
    # topk_ref:   (bb, 1, Lp)       branch_out (lane padded)
    # branch_ref: (bb, C_out, Lp)   branch2 / x_adr (lane padded)
    w_t = w_ref[...]                 # (C_out, 2*C_in)
    bias = b_ref[...]                # (C_out, 1)
    c_out = w_t.shape[0]
    lp = x_ref.shape[-1]

    # Hoisted constants (lane mask over valid length, channel ids).
    lane_ids = jax.lax.broadcasted_iota(jnp.int32, (c_out, lp), 1)
    maskf = (lane_ids < l_valid).astype(jnp.float32)
    row_ids = jax.lax.broadcasted_iota(jnp.int32, (c_out, lp), 0)
    inv_l = 1.0 / float(l_valid)
    inv_k = 1.0 / float(kth)

    for b in range(bb):
        xb = x_ref[b]                                              # (2C_in, Lp)

        # --- fused ConvTranspose1d (both taps in one K=2*C_in matmul) ---
        y = jnp.dot(w_t, xb, preferred_element_type=jnp.float32) + bias
        ym = y * maskf                                             # zero pad lanes

        # --- InstanceNorm1d, single pass (biased variance over valid length) ---
        s1 = jnp.sum(ym, axis=1, keepdims=True)
        s2 = jnp.sum(ym * ym, axis=1, keepdims=True)
        mean = s1 * inv_l
        var = s2 * inv_l - mean * mean
        yn = (ym - mean) * jax.lax.rsqrt(var + EPS_IN)

        # --- ReLU -> branch output (full-lane store; wrapper slices padding) ---
        yr = jnp.maximum(yn, 0.0)
        branch_ref[b] = yr.astype(branch_ref.dtype)

        # --- softmax over length (valid lanes only) ---
        yrm = yr * maskf                       # yr >= 0, so masked max is exact
        mx = jnp.max(yrm, axis=1, keepdims=True)
        ex = jnp.exp(yrm - mx) * maskf
        denom = jnp.sum(ex, axis=1, keepdims=True)
        sm = ex * pl.reciprocal(denom, approx=True)

        # --- top-kth over channels, mean (cc_kth_p) ---
        # Choose the cheaper extraction direction; duplicates behave like
        # torch.topk because exactly one occurrence is removed per step.
        total = jnp.sum(sm, axis=0, keepdims=True)                 # (1, Lp)
        n_min = c_out - kth
        if n_min == 0:
            top_sum = total
        elif n_min < kth:
            # Remove the (c_out - kth) smallest values from the channel sum.
            v = sm
            acc = jnp.zeros((1, lp), jnp.float32)
            for _ in range(n_min):
                cur = jnp.min(v, axis=0, keepdims=True)
                cand = jnp.where(v == cur, row_ids, c_out)
                sel = jnp.min(cand, axis=0, keepdims=True)         # first argmin
                v = jnp.where(row_ids == sel, jnp.inf, v)
                acc = acc + cur
            top_sum = total - acc
        else:
            # Extract the kth largest values directly.
            v = sm
            acc = jnp.zeros((1, lp), jnp.float32)
            for _ in range(kth):
                cur = jnp.max(v, axis=0, keepdims=True)
                cand = jnp.where(v == cur, row_ids, c_out)
                sel = jnp.min(cand, axis=0, keepdims=True)         # first argmax
                v = jnp.where(row_ids == sel, -jnp.inf, v)
                acc = acc + cur
            top_sum = acc

        topk_ref[b] = (top_sum * inv_k).astype(topk_ref.dtype)


@functools.partial(jax.jit, static_argnames=("block_b",))
def intra_adr_forward(x, w, bias, *, block_b=None):
    """x: (B, C_in, L) f32; w: (C_in, C_out, 2) ConvTranspose1d weight; bias: (C_out,).

    Returns (branch_out, branch2, x_adr):
      (B, 1, L+1), (B, C_out, L+1), (B, C_out, L+1).
    """
    B, c_in, L = x.shape
    c_out = w.shape[1]
    assert c_out >= KTH, f"cc_kth_p needs C_out >= {KTH}, got {c_out}"

    Lout = L + 1
    Lp = _round_up(Lout, LANE)           # lane-dense length

    # Batch elements per grid step: amortize per-step overhead but keep >= 2
    # grid steps when B allows, so v7x megacore can shard the batch axis.
    bb = block_b if block_b is not None else max(1, min(8, (B + 1) // 2))
    steps = -(-B // bb)
    Bp = steps * bb

    xt = x.astype(jnp.float32)
    # Tap-0 rows: x at positions [0, L); tap-1 rows: x shifted right by one.
    x0 = jnp.pad(xt, ((0, Bp - B), (0, 0), (0, Lp - L)))
    x1 = jnp.pad(xt, ((0, Bp - B), (0, 0), (1, Lp - L - 1)))
    xs = jnp.concatenate([x0, x1], axis=1)                 # (Bp, 2*C_in, Lp)

    # Stacked, transposed weight: y[o, l] = sum_k w_t[o, k] * xs[k, l]  (+ bias)
    w_t = jnp.concatenate([w[:, :, 0], w[:, :, 1]], axis=0).T.astype(jnp.float32)
    bias2d = bias.reshape(c_out, 1).astype(jnp.float32)

    kernel = functools.partial(_intra_adr_kernel, bb=bb, l_valid=Lout, kth=KTH)

    grid_spec = pltpu.PrefetchScalarGridSpec(
        num_scalar_prefetch=0,
        grid=(steps,),
        in_specs=[
            pl.BlockSpec((bb, 2 * c_in, Lp), lambda i: (i, 0, 0)),
            pl.BlockSpec((c_out, 2 * c_in), lambda i: (0, 0)),
            pl.BlockSpec((c_out, 1), lambda i: (0, 0)),
        ],
        out_specs=[
            pl.BlockSpec((bb, 1, Lp), lambda i: (i, 0, 0)),
            pl.BlockSpec((bb, c_out, Lp), lambda i: (i, 0, 0)),
        ],
    )

    topk_p, branch_p = pl.pallas_call(
        kernel,
        out_shape=(
            jax.ShapeDtypeStruct((Bp, 1, Lp), jnp.float32),
            jax.ShapeDtypeStruct((Bp, c_out, Lp), jnp.float32),
        ),
        grid_spec=grid_spec,
        compiler_params=pltpu.CompilerParams(
            dimension_semantics=("parallel",)),
    )(xs, w_t, bias2d)

    branch_out = topk_p[:B, :, :Lout]
    branch = branch_p[:B, :, :Lout]
    # branch2 and x_adr are the same tensor in the reference module.
    return branch_out, branch, branch


def _reference(x, w, bias):
    """Pure-JAX reference for verification."""
    a = jnp.einsum("bcl,co->bol", x, w[:, :, 0])
    b2 = jnp.einsum("bcl,co->bol", x, w[:, :, 1])
    y = (jnp.pad(a, ((0, 0), (0, 0), (0, 1)))
         + jnp.pad(b2, ((0, 0), (0, 0), (1, 0)))
         + bias[None, :, None])
    mean = y.mean(axis=2, keepdims=True)
    var = ((y - mean) ** 2).mean(axis=2, keepdims=True)
    yr = jnp.maximum((y - mean) * jax.lax.rsqrt(var + EPS_IN), 0.0)
    sm = jax.nn.softmax(yr, axis=2)
    topv = jax.lax.top_k(jnp.swapaxes(sm, 1, 2), KTH)[0]     # (B, L+1, KTH)
    branch_out = jnp.swapaxes(topv.mean(axis=-1, keepdims=True), 1, 2)
    return branch_out, yr, yr


if __name__ == "__main__":
    key = jax.random.PRNGKey(0)
    # (B, C_in, C_out, L): first config exercises the min-extraction top-k path
    # and 2 grid steps; second exercises bb>1, batch padding, max-extraction.
    configs = [(2, 4, 16, 16), (5, 6, 24, 40)]
    for (B, C_IN, C_OUT, L) in configs:
        kx, kw, kb, key = jax.random.split(key, 4)
        x = jax.random.normal(kx, (B, C_IN, L), dtype=jnp.float32)
        # ConvTranspose1d weight shape: (in_channels, out_channels, kernel_size)
        w = jax.random.normal(kw, (C_IN, C_OUT, 2), dtype=jnp.float32) * 0.1
        bias = jax.random.normal(kb, (C_OUT,), dtype=jnp.float32) * 0.1

        outs = jax.block_until_ready(intra_adr_forward(x, w, bias))
        refs = _reference(x, w, bias)
        # branch_out uses the approximate (EUP) reciprocal -> looser tolerance.
        tols = (1e-3, 1e-4, 1e-4)
        for o, r, tol in zip(outs, refs, tols):
            assert o.shape == r.shape, (o.shape, r.shape)
            err = float(jnp.abs(o - r).max())
            assert err <= tol, (o.shape, err)

    print("KERNEL_OK")
</pallas_src>

<mosaic_0001>
module attributes {stable_mosaic.version = 11 : i64} {
  func.func @_intra_adr_kernel(%arg0: i32, %arg1: memref<1x8x128xf32, #tpu.memory_space<vmem>>, %arg2: memref<16x8xf32, #tpu.memory_space<vmem>>, %arg3: memref<16x1xf32, #tpu.memory_space<vmem>>, %arg4: memref<1x1x128xf32, #tpu.memory_space<vmem>>, %arg5: memref<1x16x128xf32, #tpu.memory_space<vmem>>) attributes {dimension_semantics = [#tpu.dimension_semantics<parallel>], iteration_bounds = array<i64: 2>, scalar_prefetch = 0 : i64, scratch_operands = 0 : i64, tpu.core_type = #tpu.core_type<tc>, window_params = [{transform_indices = @transform_0, window_bounds = array<i64: 1, 8, 128>}, {pipeline_mode = #tpu.pipeline_mode<synchronous>, transform_indices = @transform_1, window_bounds = array<i64: 16, 8>}, {pipeline_mode = #tpu.pipeline_mode<synchronous>, transform_indices = @transform_2, window_bounds = array<i64: 16, 1>}, {transform_indices = @transform_3, window_bounds = array<i64: 1, 1, 128>}, {transform_indices = @transform_4, window_bounds = array<i64: 1, 16, 128>}]} {
    %c0 = arith.constant 0 : index
    %c0_0 = arith.constant 0 : index
    %0 = vector.load %arg2[%c0, %c0_0] : memref<16x8xf32, #tpu.memory_space<vmem>>, vector<16x8xf32>
    %c0_1 = arith.constant 0 : index
    %c0_2 = arith.constant 0 : index
    %1 = vector.load %arg3[%c0_1, %c0_2] : memref<16x1xf32, #tpu.memory_space<vmem>>, vector<16x1xf32>
    %2 = tpu.iota {dimensions = array<i32: 1>} : vector<16x128xi32>
    %c17_i32 = arith.constant 17 : i32
    %3 = vector.broadcast %c17_i32 : i32 to vector<16x128xi32>
    %4 = arith.cmpi slt, %2, %3 : vector<16x128xi32>
    %5 = arith.extui %4 : vector<16x128xi1> to vector<16x128xi32>
    %6 = arith.sitofp %5 : vector<16x128xi32> to vector<16x128xf32>
    %7 = tpu.iota {dimensions = array<i32: 0>} : vector<16x128xi32>
    %c0_3 = arith.constant 0 : index
    %c0_4 = arith.constant 0 : index
    %c0_5 = arith.constant 0 : index
    %8 = vector.load %arg1[%c0_3, %c0_4, %c0_5] : memref<1x8x128xf32, #tpu.memory_space<vmem>>, vector<1x8x128xf32>
    %9 = vector.shape_cast %8 : vector<1x8x128xf32> to vector<8x128xf32>
    %cst = arith.constant dense<0.000000e+00> : vector<16x128xf32>
    %10 = tpu.matmul %0, %9, %cst {dimension_numbers = #tpu.dot_dimension_numbers<[1], [0], [0], [1], [0, 0, 1, 1], [], []>} : vector<16x8xf32>, vector<8x128xf32>, vector<16x128xf32> -> vector<16x128xf32>
    %11 = vector.broadcast %1 : vector<16x1xf32> to vector<16x128xf32>
    %12 = arith.addf %10, %11 : vector<16x128xf32>
    %13 = arith.mulf %12, %6 : vector<16x128xf32>
    %cst_6 = arith.constant dense<0.000000e+00> : vector<16xf32>
    %14 = vector.multi_reduction <add>, %13, %cst_6 [1] : vector<16x128xf32> to vector<16xf32>
    %15 = vector.shape_cast %14 : vector<16xf32> to vector<16x1xf32>
    %16 = arith.mulf %13, %13 : vector<16x128xf32>
    %cst_7 = arith.constant dense<0.000000e+00> : vector<16xf32>
    %17 = vector.multi_reduction <add>, %16, %cst_7 [1] : vector<16x128xf32> to vector<16xf32>
    %18 = vector.shape_cast %17 : vector<16xf32> to vector<16x1xf32>
    %cst_8 = arith.constant 0.0588235296 : f32
    %19 = vector.broadcast %cst_8 : f32 to vector<16x1xf32>
    %20 = arith.mulf %15, %19 : vector<16x1xf32>
    %cst_9 = arith.constant 0.0588235296 : f32
    %21 = vector.broadcast %cst_9 : f32 to vector<16x1xf32>
    %22 = arith.mulf %18, %21 : vector<16x1xf32>
    %23 = arith.mulf %20, %20 : vector<16x1xf32>
    %24 = arith.subf %22, %23 : vector<16x1xf32>
    %25 = vector.broadcast %20 : vector<16x1xf32> to vector<16x128xf32>
    %26 = arith.subf %13, %25 : vector<16x128xf32>
    %cst_10 = arith.constant 9.99999974E-6 : f32
    %27 = vector.broadcast %cst_10 : f32 to vector<16x1xf32>
    %28 = arith.addf %24, %27 : vector<16x1xf32>
    %29 = math.rsqrt %28 : vector<16x1xf32>
    %30 = vector.broadcast %29 : vector<16x1xf32> to vector<16x128xf32>
    %31 = arith.mulf %26, %30 : vector<16x128xf32>
    %cst_11 = arith.constant 0.000000e+00 : f32
    %32 = vector.broadcast %cst_11 : f32 to vector<16x128xf32>
    %33 = arith.maximumf %31, %32 : vector<16x128xf32>
    %c0_12 = arith.constant 0 : index
    %c0_13 = arith.constant 0 : index
    %c0_14 = arith.constant 0 : index
    %34 = vector.load %arg5[%c0_12, %c0_13, %c0_14] : memref<1x16x128xf32, #tpu.memory_space<vmem>>, vector<1x16x128xf32>
    %35 = vector.shape_cast %34 : vector<1x16x128xf32> to vector<16x128xf32>
    %36 = vector.shape_cast %33 : vector<16x128xf32> to vector<1x16x128xf32>
    tpu.vector_store %arg5[%c0_12, %c0_13, %c0_14], %36 {strides = array<i32>} : memref<1x16x128xf32, #tpu.memory_space<vmem>>, vector<1x16x128xf32>,
    %37 = arith.mulf %33, %6 : vector<16x128xf32>
    %cst_15 = arith.constant dense<0xFF800000> : vector<16xf32>
    %38 = vector.multi_reduction <maximumf>, %37, %cst_15 [1] : vector<16x128xf32> to vector<16xf32>
    %39 = vector.shape_cast %38 : vector<16xf32> to vector<16x1xf32>
    %40 = vector.broadcast %39 : vector<16x1xf32> to vector<16x128xf32>
    %41 = arith.subf %37, %40 : vector<16x128xf32>
    %42 = math.exp %41 : vector<16x128xf32>
    %43 = arith.mulf %42, %6 : vector<16x128xf32>
    %cst_16 = arith.constant dense<0.000000e+00> : vector<16xf32>
    %44 = vector.multi_reduction <add>, %43, %cst_16 [1] : vector<16x128xf32> to vector<16xf32>
    %45 = vector.shape_cast %44 : vector<16xf32> to vector<16x1xf32>
    %46 = tpu.reciprocal %45 {approx = true} : vector<16x1xf32> -> vector<16x1xf32>
    %47 = vector.broadcast %46 : vector<16x1xf32> to vector<16x128xf32>
    %48 = arith.mulf %43, %47 : vector<16x128xf32>
    %cst_17 = arith.constant dense<0.000000e+00> : vector<128xf32>
    %49 = vector.multi_reduction <add>, %48, %cst_17 [0] : vector<16x128xf32> to vector<128xf32>
    %50 = vector.shape_cast %49 : vector<128xf32> to vector<1x128xf32>
    %cst_18 = arith.constant 0.000000e+00 : f32
    %51 = vector.broadcast %cst_18 : f32 to vector<1x128xf32>
    %cst_19 = arith.constant dense<0x7F800000> : vector<128xf32>
    %52 = vector.multi_reduction <minimumf>, %48, %cst_19 [0] : vector<16x128xf32> to vector<128xf32>
    %53 = vector.shape_cast %52 : vector<128xf32> to vector<1x128xf32>
    %54 = vector.broadcast %53 : vector<1x128xf32> to vector<16x128xf32>
    %55 = arith.cmpf oeq, %48, %54 : vector<16x128xf32>
    %c16_i32 = arith.constant 16 : i32
    %56 = vector.broadcast %c16_i32 : i32 to vector<16x128xi32>
    %57 = arith.select %55, %7, %56 : vector<16x128xi1>, vector<16x128xi32>
    %cst_20 = arith.constant dense<2147483647> : vector<128xi32>
    %58 = vector.multi_reduction <minsi>, %57, %cst_20 [0] : vector<16x128xi32> to vector<128xi32>
    %59 = vector.shape_cast %58 : vector<128xi32> to vector<1x128xi32>
    %60 = vector.broadcast %59 : vector<1x128xi32> to vector<16x128xi32>
    %61 = arith.cmpi eq, %7, %60 : vector<16x128xi32>
    %cst_21 = arith.constant 0x7F800000 : f32
    %62 = vector.broadcast %cst_21 : f32 to vector<16x128xf32>
    %63 = arith.select %61, %62, %48 : vector<16x128xi1>, vector<16x128xf32>
    %64 = arith.addf %51, %53 : vector<1x128xf32>
    %cst_22 = arith.constant dense<0x7F800000> : vector<128xf32>
    %65 = vector.multi_reduction <minimumf>, %63, %cst_22 [0] : vector<16x128xf32> to vector<128xf32>
    %66 = vector.shape_cast %65 : vector<128xf32> to vector<1x128xf32>
    %67 = vector.broadcast %66 : vector<1x128xf32> to vector<16x128xf32>
    %68 = arith.cmpf oeq, %63, %67 : vector<16x128xf32>
    %c16_i32_23 = arith.constant 16 : i32
    %69 = vector.broadcast %c16_i32_23 : i32 to vector<16x128xi32>
    %70 = arith.select %68, %7, %69 : vector<16x128xi1>, vector<16x128xi32>
    %cst_24 = arith.constant dense<2147483647> : vector<128xi32>
    %71 = vector.multi_reduction <minsi>, %70, %cst_24 [0] : vector<16x128xi32> to vector<128xi32>
    %72 = vector.shape_cast %71 : vector<128xi32> to vector<1x128xi32>
    %73 = vector.broadcast %72 : vector<1x128xi32> to vector<16x128xi32>
    %74 = arith.cmpi eq, %7, %73 : vector<16x128xi32>
    %cst_25 = arith.constant 0x7F800000 : f32
    %75 = vector.broadcast %cst_25 : f32 to vector<16x128xf32>
    %76 = arith.select %74, %75, %63 : vector<16x128xi1>, vector<16x128xf32>
    %77 = arith.addf %64, %66 : vector<1x128xf32>
    %cst_26 = arith.constant dense<0x7F800000> : vector<128xf32>
    %78 = vector.multi_reduction <minimumf>, %76, %cst_26 [0] : vector<16x128xf32> to vector<128xf32>
    %79 = vector.shape_cast %78 : vector<128xf32> to vector<1x128xf32>
    %80 = vector.broadcast %79 : vector<1x128xf32> to vector<16x128xf32>
    %81 = arith.cmpf oeq, %76, %80 : vector<16x128xf32>
    %c16_i32_27 = arith.constant 16 : i32
    %82 = vector.broadcast %c16_i32_27 : i32 to vector<16x128xi32>
    %83 = arith.select %81, %7, %82 : vector<16x128xi1>, vector<16x128xi32>
    %cst_28 = arith.constant dense<2147483647> : vector<128xi32>
    %84 = vector.multi_reduction <minsi>, %83, %cst_28 [0] : vector<16x128xi32> to vector<128xi32>
    %85 = vector.shape_cast %84 : vector<128xi32> to vector<1x128xi32>
    %86 = vector.broadcast %85 : vector<1x128xi32> to vector<16x128xi32>
    %87 = arith.cmpi eq, %7, %86 : vector<16x128xi32>
    %cst_29 = arith.constant 0x7F800000 : f32
    %88 = vector.broadcast %cst_29 : f32 to vector<16x128xf32>
    %89 = arith.select %87, %88, %76 : vector<16x128xi1>, vector<16x128xf32>
    %90 = arith.addf %77, %79 : vector<1x128xf32>
    %cst_30 = arith.constant dense<0x7F800000> : vector<128xf32>
    %91 = vector.multi_reduction <minimumf>, %89, %cst_30 [0] : vector<16x128xf32> to vector<128xf32>
    %92 = vector.shape_cast %91 : vector<128xf32> to vector<1x128xf32>
    %93 = vector.broadcast %92 : vector<1x128xf32> to vector<16x128xf32>
    %94 = arith.cmpf oeq, %89, %93 : vector<16x128xf32>
    %c16_i32_31 = arith.constant 16 : i32
    %95 = vector.broadcast %c16_i32_31 : i32 to vector<16x128xi32>
    %96 = arith.select %94, %7, %95 : vector<16x128xi1>, vector<16x128xi32>
    %cst_32 = arith.constant dense<2147483647> : vector<128xi32>
    %97 = vector.multi_reduction <minsi>, %96, %cst_32 [0] : vector<16x128xi32> to vector<128xi32>
    %98 = vector.shape_cast %97 : vector<128xi32> to vector<1x128xi32>
    %99 = vector.broadcast %98 : vector<1x128xi32> to vector<16x128xi32>
    %100 = arith.cmpi eq, %7, %99 : vector<16x128xi32>
    %cst_33 = arith.constant 0x7F800000 : f32
    %101 = vector.broadcast %cst_33 : f32 to vector<16x128xf32>
    %102 = arith.select %100, %101, %89 : vector<16x128xi1>, vector<16x128xf32>
    %103 = arith.addf %90, %92 : vector<1x128xf32>
    %cst_34 = arith.constant dense<0x7F800000> : vector<128xf32>
    %104 = vector.multi_reduction <minimumf>, %102, %cst_34 [0] : vector<16x128xf32> to vector<128xf32>
    %105 = vector.shape_cast %104 : vector<128xf32> to vector<1x128xf32>
    %106 = vector.broadcast %105 : vector<1x128xf32> to vector<16x128xf32>
    %107 = arith.cmpf oeq, %102, %106 : vector<16x128xf32>
    %c16_i32_35 = arith.constant 16 : i32
    %108 = vector.broadcast %c16_i32_35 : i32 to vector<16x128xi32>
    %109 = arith.select %107, %7, %108 : vector<16x128xi1>, vector<16x128xi32>
    %cst_36 = arith.constant dense<2147483647> : vector<128xi32>
    %110 = vector.multi_reduction <minsi>, %109, %cst_36 [0] : vector<16x128xi32> to vector<128xi32>
    %111 = vector.shape_cast %110 : vector<128xi32> to vector<1x128xi32>
    %112 = vector.broadcast %111 : vector<1x128xi32> to vector<16x128xi32>
    %113 = arith.cmpi eq, %7, %112 : vector<16x128xi32>
    %cst_37 = arith.constant 0x7F800000 : f32
    %114 = vector.broadcast %cst_37 : f32 to vector<16x128xf32>
    %115 = arith.select %113, %114, %102 : vector<16x128xi1>, vector<16x128xf32>
    %116 = arith.addf %103, %105 : vector<1x128xf32>
    %cst_38 = arith.constant dense<0x7F800000> : vector<128xf32>
    %117 = vector.multi_reduction <minimumf>, %115, %cst_38 [0] : vector<16x128xf32> to vector<128xf32>
    %118 = vector.shape_cast %117 : vector<128xf32> to vector<1x128xf32>
    %119 = arith.addf %116, %118 : vector<1x128xf32>
    %120 = arith.subf %50, %119 : vector<1x128xf32>
    %cst_39 = arith.constant 1.000000e-01 : f32
    %121 = vector.broadcast %cst_39 : f32 to vector<1x128xf32>
    %122 = arith.mulf %120, %121 : vector<1x128xf32>
    %c0_40 = arith.constant 0 : index
    %c0_41 = arith.constant 0 : index
    %c0_42 = arith.constant 0 : index
    %123 = vector.load %arg4[%c0_40, %c0_41, %c0_42] : memref<1x1x128xf32, #tpu.memory_space<vmem>>, vector<1x1x128xf32>
    %124 = vector.shape_cast %123 : vector<1x1x128xf32> to vector<1x128xf32>
    %125 = vector.shape_cast %122 : vector<1x128xf32> to vector<1x1x128xf32>
    tpu.vector_store %arg4[%c0_40, %c0_41, %c0_42], %125 {strides = array<i32>} : memref<1x1x128xf32, #tpu.memory_space<vmem>>, vector<1x1x128xf32>,
    return
  }
  func.func @transform_0(%arg0: i32) -> (i32, i32, i32) {
    %c0_i32 = arith.constant 0 : i32
    %c0_i32_0 = arith.constant 0 : i32
    %c0_i32_1 = arith.constant 0 : i32
    return %arg0, %c0_i32, %c0_i32_0 : i32, i32, i32
  }
  func.func @transform_1(%arg0: i32) -> (i32, i32) {
    %c0_i32 = arith.constant 0 : i32
    %c0_i32_0 = arith.constant 0 : i32
    %c0_i32_1 = arith.constant 0 : i32
    return %c0_i32, %c0_i32_0 : i32, i32
  }
  func.func @transform_2(%arg0: i32) -> (i32, i32) {
    %c0_i32 = arith.constant 0 : i32
    %c0_i32_0 = arith.constant 0 : i32
    %c0_i32_1 = arith.constant 0 : i32
    return %c0_i32, %c0_i32_0 : i32, i32
  }
  func.func @transform_3(%arg0: i32) -> (i32, i32, i32) {
    %c0_i32 = arith.constant 0 : i32
    %c0_i32_0 = arith.constant 0 : i32
    %c0_i32_1 = arith.constant 0 : i32
    return %arg0, %c0_i32, %c0_i32_0 : i32, i32, i32
  }
  func.func @transform_4(%arg0: i32) -> (i32, i32, i32) {
    %c0_i32 = arith.constant 0 : i32
    %c0_i32_0 = arith.constant 0 : i32
    %c0_i32_1 = arith.constant 0 : i32
    return %arg0, %c0_i32, %c0_i32_0 : i32, i32, i32
  }
}

</mosaic_0001>

<llo_original>
// kernel: intra_adr_forward.1
$region0: #{intra_adr_forward.1}
  #allocation0 [shape = 'u32[]', space=smem, size = 0x4, offset = 0x4, fixed_abs, tag = 'smem constant byte address 0x4 - core index']
  #allocation1 [shape = 'u32[72,128]{1,0:T(1,128)}', space=vmem, size = 0x9000, scoped, tag = 'internal scratch']
  %s0 = inlined_call_operand.vmem [shape: f32[2,8,128], index: 0, kind: input, shape index: {}]
  %s1 = inlined_call_operand.vmem [shape: f32[16,8], index: 1, kind: input, shape index: {}]
  %s2 = inlined_call_operand.vmem [shape: f32[16,1], index: 2, kind: input, shape index: {}]
  %s3 = inlined_call_operand.hbm [shape: f32[2,1,128], index: 3, kind: output, shape index: {0}]
  %s4 = inlined_call_operand.vmem [shape: f32[2,16,128], index: 4, kind: output, shape index: {1}]
  %5 = xla_tuple %s3, %s4
  %s6 = sld [smem:[#allocation0]]
  $region53: #{intra_adr_forward.1} parent=0
    _
  %s8 = ssub.s32 1, %s6
  %s9 = scalar_select 0, %s8, %s6
  $region1: #{intra_adr_forward.1} parent=0
    #allocation2 [shape = 'u8[1024]{0}', space=vmem, size = 0x400, scoped, tag = 'output window, operand 0']
    #allocation3 [shape = 's32[2]{0}', space=sflag, size = 0x8, scoped, tag = 'scoped memory for intra_adr_forward.1']
    %10 = vsyncpa [#allocation3], 0
    %s11 = scalar_lea.sflag [#allocation3], 1
    %12 = vsyncpa %s11, 0
    loop: start=0, step=1, limit=4
    $region2: #{intra_adr_forward.1} parent=1 // loop_pre_header
      _
    $region3: #{intra_adr_forward.1} parent=1 // loop_header
      %s14 = sphi 0, %s18
      %p15 = scmp.ge.s32.totalorder %s14, 4
      %s24 = sphi 0, %s26
      %s27 = sphi 0, %s24
      %s28 = sphi 0, %s27
      %s44 = sphi 0, %s28
      %s48 = sphi 0, %s48
      %s50 = sphi 0, %s48
      %s51 = sphi 0, %s50
      %s65 = sphi 0, %s51
      %s69 = sphi 0, %s69
      %s71 = sphi 0, %s69
      %s72 = sphi 0, %s71
      %s86 = sphi 0, %s72
      %s92 = sphi 0, %s94
      %s95 = sphi 0, %s92
      %s96 = sphi 0, %s95
      %s112 = sphi 0, %s96
      %s118 = sphi 0, %s120
      %s121 = sphi 0, %s118
      %s122 = sphi 0, %s121
      %s138 = sphi 0, %s122
    $region4: #{intra_adr_forward.1} parent=1 // loop_header_branch
      %17 = sbr.rel (%p15) target = $region8
    $region5: #{intra_adr_forward.1} parent=1 // loop_body
      %s19 = ssub.s32 %s14, 1
      %s20 = ssub.s32 %s14, 2
      %s21 = sadd.s32 %s14, 1
      %s22 = ssub.s32 %s14, %s21
      %p23 = scmp.eq.s32.totalorder %s22, 0
      %s25 = sadd.s32 %s24, 1
      %s26 = scalar_select %p23, %s24, %s25
      %p29 = pneg %p23
      %p30 = scmp.eq.s32.totalorder %s14, 1
      %p31 = por %p29, %p30
      %p32 = scmp.ne.s32.totalorder %s24, %s27
      %p33 = scmp.eq.s32.totalorder %s14, 0
      %p34 = por %p32, %p33
      %p35 = scmp.ne.s32.totalorder %s24, %s27
      %p36 = scmp.eq.s32.totalorder %s19, 1
      %p37 = por %p35, %p36
      %p38 = scmp.ne.s32.totalorder %s27, %s28
      %p39 = scmp.eq.s32.totalorder %s19, 0
      %p40 = por %p38, %p39
      %p41 = scmp.ne.s32.totalorder %s27, %s28
      %p42 = scmp.eq.s32.totalorder %s20, 1
      %p43 = por %p41, %p42
      %p45 = scmp.ne.s32.totalorder %s28, %s44
      %p46 = scmp.eq.s32.totalorder %s20, 0
      %p47 = por %p45, %p46
      %s49 = sadd.s32 %s48, 1
      %p52 = scmp.eq.s32.totalorder %s14, 1
      %p53 = scmp.ne.s32.totalorder %s48, %s50
      %p54 = scmp.eq.s32.totalorder %s14, 0
      %p55 = por %p53, %p54
      %p56 = scmp.ne.s32.totalorder %s48, %s50
      %p57 = scmp.eq.s32.totalorder %s19, 1
      %p58 = por %p56, %p57
      %p59 = scmp.ne.s32.totalorder %s50, %s51
      %p60 = scmp.eq.s32.totalorder %s19, 0
      %p61 = por %p59, %p60
      %p62 = scmp.ne.s32.totalorder %s50, %s51
      %p63 = scmp.eq.s32.totalorder %s20, 1
      %p64 = por %p62, %p63
      %p66 = scmp.ne.s32.totalorder %s51, %s65
      %p67 = scmp.eq.s32.totalorder %s20, 0
      %p68 = por %p66, %p67
      %s70 = sadd.s32 %s69, 1
      %p73 = scmp.eq.s32.totalorder %s14, 1
      %p74 = scmp.ne.s32.totalorder %s69, %s71
      %p75 = scmp.eq.s32.totalorder %s14, 0
      %p76 = por %p74, %p75
      %p77 = scmp.ne.s32.totalorder %s69, %s71
      %p78 = scmp.eq.s32.totalorder %s19, 1
      %p79 = por %p77, %p78
      %p80 = scmp.ne.s32.totalorder %s71, %s72
      %p81 = scmp.eq.s32.totalorder %s19, 0
      %p82 = por %p80, %p81
      %p83 = scmp.ne.s32.totalorder %s71, %s72
      %p84 = scmp.eq.s32.totalorder %s20, 1
      %p85 = por %p83, %p84
      %p87 = scmp.ne.s32.totalorder %s72, %s86
      %p88 = scmp.eq.s32.totalorder %s20, 0
      %p89 = por %p87, %p88
      %s90 = ssub.s32 %s14, %s21
      %p91 = scmp.eq.s32.totalorder %s90, 0
      %s93 = sadd.s32 %s92, 1
      %s94 = scalar_select %p91, %s92, %s93
      %p97 = pneg %p91
      %p98 = scmp.eq.s32.totalorder %s14, 1
      %p99 = por %p97, %p98
      %p100 = scmp.ne.s32.totalorder %s92, %s95
      %p101 = scmp.eq.s32.totalorder %s14, 0
      %p102 = por %p100, %p101
      %p103 = scmp.ne.s32.totalorder %s92, %s95
      %p104 = scmp.eq.s32.totalorder %s19, 1
      %p105 = por %p103, %p104
      %p106 = scmp.ne.s32.totalorder %s95, %s96
      %p107 = scmp.eq.s32.totalorder %s19, 0
      %p108 = por %p106, %p107
      %p109 = scmp.ne.s32.totalorder %s95, %s96
      %p110 = scmp.eq.s32.totalorder %s20, 1
      %p111 = por %p109, %p110
      %p113 = scmp.ne.s32.totalorder %s96, %s112
      %p114 = scmp.eq.s32.totalorder %s20, 0
      %p115 = por %p113, %p114
      %s116 = ssub.s32 %s14, %s21
      %p117 = scmp.eq.s32.totalorder %s116, 0
      %s119 = sadd.s32 %s118, 1
      %s120 = scalar_select %p117, %s118, %s119
      %p123 = pneg %p117
      %p124 = scmp.eq.s32.totalorder %s14, 1
      %p125 = por %p123, %p124
      %p126 = scmp.ne.s32.totalorder %s118, %s121
      %p127 = scmp.eq.s32.totalorder %s14, 0
      %p128 = por %p126, %p127
      %p129 = scmp.ne.s32.totalorder %s118, %s121
      %p130 = scmp.eq.s32.totalorder %s19, 1
      %p131 = por %p129, %p130
      %p132 = scmp.ne.s32.totalorder %s121, %s122
      %p133 = scmp.eq.s32.totalorder %s19, 0
      %p134 = por %p132, %p133
      %p135 = scmp.ne.s32.totalorder %s121, %s122
      %p136 = scmp.eq.s32.totalorder %s20, 1
      %p137 = por %p135, %p136
      %p139 = scmp.ne.s32.totalorder %s122, %s138
      %p140 = scmp.eq.s32.totalorder %s20, 0
      %p141 = por %p139, %p140
      %p142 = scmp.le.s32.totalorder 1, %s14
      %p143 = scmp.lt.s32.totalorder %s14, 3
      %p144 = pnand %p142, %p143
      %p145 = pneg %p144
      // Predicated region
      $region9: #{intra_adr_forward.1} parent=5 // pred_check
        _
      $region10: #{intra_adr_forward.1} parent=5 // pred_check_branch
        %147 = sbr.rel (%p144) target = $region12
      $region11: #{intra_adr_forward.1} parent=5 // pred_region
        %s148 = ssub.s32 %s14, 1
        // Predicated region
        $region13: #{intra_adr_forward.1} parent=11 // pred_check
          %p149 = pneg %p61
        $region14: #{intra_adr_forward.1} parent=11 // pred_check_branch
          %151 = sbr.rel (%p149) target = $region16
        $region15: #{intra_adr_forward.1} parent=11 // pred_region
          _
        $region16: #{intra_adr_forward.1} parent=11 // pred_fallthru
          _
        // Predicated region
        $region17: #{intra_adr_forward.1} parent=11 // pred_check
          %p152 = pneg %p82
        $region18: #{intra_adr_forward.1} parent=11 // pred_check_branch
          %154 = sbr.rel (%p152) target = $region20
        $region19: #{intra_adr_forward.1} parent=11 // pred_region
          _
        $region20: #{intra_adr_forward.1} parent=11 // pred_fallthru
          _
      $region12: #{intra_adr_forward.1} parent=5 // pred_fallthru
        _
      %p155 = scmp.lt.s32.totalorder %s14, 2
      // Predicated region
      $region21: #{intra_adr_forward.1} parent=5 // pred_check
        %p156 = pneg %p155
      $region22: #{intra_adr_forward.1} parent=5 // pred_check_branch
        %158 = sbr.rel (%p156) target = $region24
      $region23: #{intra_adr_forward.1} parent=5 // pred_region
        // Predicated region
        $region25: #{intra_adr_forward.1} parent=23 // pred_check
          %p159 = pneg %p34
        $region26: #{intra_adr_forward.1} parent=23 // pred_check_branch
          %161 = sbr.rel (%p159) target = $region28
        $region27: #{intra_adr_forward.1} parent=23 // pred_region
          %p162 = scmp.lt.s32.totalorder %s14, 1
          %s163 = scalar_select %p162, %s14, 1
          %s164 = smul.addr %s163, 8
          %s165 = scalar_lea.vmem %s0, %s164
        $region28: #{intra_adr_forward.1} parent=23 // pred_fallthru
          _
      $region24: #{intra_adr_forward.1} parent=5 // pred_fallthru
        _
      %p166 = scmp.le.s32.totalorder 1, %s14
      %p167 = scmp.lt.s32.totalorder %s14, 3
      %p168 = pnand %p166, %p167
      %p169 = pneg %p168
      // Predicated region
      $region29: #{intra_adr_forward.1} parent=5 // pred_check
        _
      $region30: #{intra_adr_forward.1} parent=5 // pred_check_branch
        %171 = sbr.rel (%p168) target = $region32
      $region31: #{intra_adr_forward.1} parent=5 // pred_region
        %s172 = ssub.s32 %s14, 1
        %p173 = scmp.lt.s32.totalorder %s19, 1
        %s174 = scalar_select %p173, %s19, 1
        %s175 = smul.addr %s174, 8
        %s176 = scalar_lea.vmem %s0, %s175
        %p177 = pneg %p40
        %p178 = pneg %p37
        %p179 = pneg %p61
        %p180 = pneg %p58
        %p181 = pneg %p82
        %p182 = pneg %p79
        %p183 = pneg %p108
        %p184 = pneg %p105
        %s185 = sand.u32 %s95, 1
        %s186 = scalar_lea.sflag [#allocation3], %s185
        %s187 = sand.u32 %s95, 1
        %s188 = scalar_lea.vmem [#allocation2], %s187
        %p189 = pneg %p134
        %p190 = pneg %p131
        %p191 = scmp.lt.s32.totalorder %s19, 1
        %s192 = scalar_select %p191, %s19, 1
        %s193 = smul.addr %s192, 2
        %s194 = smul.addr %s193, 8
        %s195 = scalar_lea.vmem %s4, %s194
        %p196 = scmp.lt.s32.totalorder %s19, 1
        %s197 = scalar_select %p196, %s19, 1
        %s198 = smul.addr %s197, 8
        %s199 = scalar_lea.vmem %s0, %s198
        %p200 = scmp.lt.s32.totalorder %s19, 1
        %s201 = scalar_select %p200, %s19, 1
        %s202 = smul.addr %s201, 2
        %s203 = smul.addr %s202, 8
        %s204 = scalar_lea.vmem %s4, %s203
        %v205 = vld [vmem:[%s1] sm:$0xff]
        %v206 = vld [vmem:[%s1 + $0x8] sm:$0xff]
        %v207 = vld [vmem:[%s2] sm:$0xff]
        %v208 = vld [vmem:[%s2 + $0x8] sm:$0xff]
        %v209 = vlaneseq
        %v210 = vand.u32 %v209, 127
        %vm211 = vcmp.lt.s32.totalorder %v210, 17
        %v212 = vsel %vm211, 1, 0
        %v213 = vcvt.s32.f32 %v212
        %v214 = vlaneseq
        %v215 = vshrl.u32 %v214, 7
        %v216 = vadd.s32 %v215, 8
        %v217 = vld [vmem:[%s199] sm:$0xff]
        %219 = vset.pattern.permute.xlu0 0
        %220 = vperm.xlu0 %219, %v207
        %v221 = vpop.permute.xlu0 %220
        %224 = vset.pattern.permute.xlu0 0
        %225 = vperm.xlu0 %224, %v208
        %v226 = vpop.permute.xlu0 %225
        %vm228 = vcmask 64512
        %v230 = vsel %vm228, %v205, 0
        %v233 = vsel %vm228, %v206, 0
        %235 = vmatpush.msra.mxu0 0.0
        %236 = vmatpush.msra.mxu0 0.0
        %237 = vmatpush.msra.mxu0 0.0
        %238 = vmatpush.msra.mxu0 0.0
        %239 = vmatpush.msra.mxu0 0.0
        %240 = vmatpush.msra.mxu0 0.0
        %241 = vmatpush.msra.mxu0 0.0
        %242 = vmatpush.msra.mxu0 0.0
        %243 = vmatpush.msra.mxu0 0.0
        %244 = vmatpush.msra.mxu0 0.0
        %245 = vmatpush.msra.mxu0 0.0
        %246 = vmatpush.msra.mxu0 0.0
        %247 = vmatpush.msra.mxu0 0.0
        %248 = vmatpush.msra.mxu0 0.0
        %249 = vmatpush.msra.mxu0 0.0
        %250 = vmatpush.msra.mxu0 %v217
        %251 = vmatmul.f32.gmra.mxu0 %v230
        %v252 = vpop.f32.mrf.mxu0
        %v253 = vadd.f32 %v221, %v252
        %254 = vmatmul.f32.gmra.mxu0 %v233
        %v255 = vpop.f32.mrf.mxu0
        %v256 = vadd.f32 %v226, %v255
        %257 = vdwg.mxu0
        %v258 = vmul.f32 %v253, %v213
        %v259 = vmul.f32 %v256, %v213
        %260 = vadd.xlane.f32.xlu0 %v258
        %v261 = vpop.xlane.xlu0 %260
        %262 = vadd.xlane.f32.xlu0 %v259
        %v263 = vpop.xlane.xlu0 %262
        %v264 = vmul.f32 %v258, %v258
        %v265 = vmul.f32 %v259, %v259
        %266 = vadd.xlane.f32.xlu0 %v264
        %v267 = vpop.xlane.xlu0 %266
        %268 = vadd.xlane.f32.xlu0 %v265
        %v269 = vpop.xlane.xlu0 %268
        %v270 = vmul.f32 %v261, 0.05882353
        %v271 = vmul.f32 %v263, 0.05882353
        %v272 = vmul.f32 %v267, 0.05882353
        %v273 = vmul.f32 %v269, 0.05882353
        %v274 = vmul.f32 %v270, %v270
        %v275 = vmul.f32 %v271, %v271
        %v276 = vsub.f32 %v272, %v274
        %v277 = vsub.f32 %v273, %v275
        %v278 = vsub.f32 %v258, %v270
        %v279 = vsub.f32 %v259, %v271
        %v280 = vadd.f32 %v276, 1e-05
        %v281 = vadd.f32 %v277, 1e-05
        %v282 = vrsqrt.pop %v280
        %v283 = vmul.f32 %v282, %v280
        %v284 = vmul.f32 %v283, %v282
        %v285 = vmul.f32 0.5, %v284
        %v286 = vsub.f32 1.5, %v285
        %v287 = vmul.f32 %v282, %v286
        %vm288 = vweird.f32 %v280
        %vm289 = vweird.f32 %v282
        %vm290 = vmor %vm288, %vm289
        %v291 = vsel %vm290, %v282, %v287
        %v292 = vrsqrt.pop %v281
        %v293 = vmul.f32 %v292, %v281
        %v294 = vmul.f32 %v293, %v292
        %v295 = vmul.f32 0.5, %v294
        %v296 = vsub.f32 1.5, %v295
        %v297 = vmul.f32 %v292, %v296
        %vm298 = vweird.f32 %v281
        %vm299 = vweird.f32 %v292
        %vm300 = vmor %vm298, %vm299
        %v301 = vsel %vm300, %v292, %v297
        %v302 = vmul.f32 %v278, %v291
        %v303 = vmul.f32 %v279, %v301
        %v304 = vmax.f32 %v302, 0.0
        %v305 = vmax.f32 %v303, 0.0
        %306 = vst [vmem:[%s204] sm:$0xff] %v304
        %307 = vst [vmem:[%s204 + $0x8] sm:$0xff] %v305
        %v308 = vmul.f32 %v304, %v213
        %v309 = vmul.f32 %v305, %v213
        %310 = vmax.xlane.f32.xlu0 %v308
        %v311 = vpop.xlane.xlu0 %310
        %312 = vmax.xlane.f32.xlu0 %v309
        %v313 = vpop.xlane.xlu0 %312
        %v314 = vsub.f32 %v308, %v311
        %v315 = vsub.f32 %v309, %v313
        %v316 = vmul.f32 %v314, 1.442695
        %v317 = vpow.pop %v316
        %v318 = vmul.f32 %v315, 1.442695
        %v319 = vpow.pop %v318
        %v320 = vmul.f32 %v317, %v213
        %v321 = vmul.f32 %v319, %v213
        %322 = vadd.xlane.f32.xlu0 %v320
        %v323 = vpop.xlane.xlu0 %322
        %324 = vadd.xlane.f32.xlu0 %v321
        %v325 = vpop.xlane.xlu0 %324
        %v326 = vrcp.pop %v323
        %v327 = vrcp.pop %v325
        %v328 = vmul.f32 %v320, %v326
        %v329 = vmul.f32 %v321, %v327
        %v330 = vadd.f32 %v328, %v329
        %v331 = vrot.slane %v330, 4
        %v332 = vadd.f32 %v330, %v331
        %v333 = vrot.slane %v332, 2
        %v334 = vadd.f32 %v332, %v333
        %v335 = vrot.slane %v334, 1
        %v336 = vadd.f32 %v334, %v335
        %v337 = vmin.f32 %v328, %v329
        %v338 = vrot.slane %v337, 4
        %v339 = vmin.f32 %v337, %v338
        %v340 = vrot.slane %v339, 2
        %v341 = vmin.f32 %v339, %v340
        %v342 = vrot.slane %v341, 1
        %v343 = vmin.f32 %v341, %v342
        %vm344 = vcmp.eq.f32.partialorder %v328, %v343
        %vm345 = vcmp.eq.f32.partialorder %v329, %v343
        %v346 = vsel %vm344, %v215, 16
        %v347 = vsel %vm345, %v216, 16
        %vm348 = vcmp.lt.s32.totalorder %v346, %v347
        %v349 = vsel %vm348, %v346, %v347
        %v350 = vrot.slane %v349, 4
        %vm351 = vcmp.lt.s32.totalorder %v349, %v350
        %v352 = vsel %vm351, %v349, %v350
        %v353 = vrot.slane %v352, 2
        %vm354 = vcmp.lt.s32.totalorder %v352, %v353
        %v355 = vsel %vm354, %v352, %v353
        %v356 = vrot.slane %v355, 1
        %vm357 = vcmp.lt.s32.totalorder %v355, %v356
        %v358 = vsel %vm357, %v355, %v356
        %vm359 = vcmp.eq.s32.totalorder %v215, %v358
        %vm360 = vcmp.eq.s32.totalorder %v216, %v358
        %v361 = vsel %vm359, inf, %v328
        %v362 = vsel %vm360, inf, %v329
        %v363 = vadd.f32 %v343, 0.0
        %v364 = vmin.f32 %v361, %v362
        %v365 = vrot.slane %v364, 4
        %v366 = vmin.f32 %v364, %v365
        %v367 = vrot.slane %v366, 2
        %v368 = vmin.f32 %v366, %v367
        %v369 = vrot.slane %v368, 1
        %v370 = vmin.f32 %v368, %v369
        %vm371 = vcmp.eq.f32.partialorder %v361, %v370
        %vm372 = vcmp.eq.f32.partialorder %v362, %v370
        %v373 = vsel %vm371, %v215, 16
        %v374 = vsel %vm372, %v216, 16
        %vm375 = vcmp.lt.s32.totalorder %v373, %v374
        %v376 = vsel %vm375, %v373, %v374
        %v377 = vrot.slane %v376, 4
        %vm378 = vcmp.lt.s32.totalorder %v376, %v377
        %v379 = vsel %vm378, %v376, %v377
        %v380 = vrot.slane %v379, 2
        %vm381 = vcmp.lt.s32.totalorder %v379, %v380
        %v382 = vsel %vm381, %v379, %v380
        %v383 = vrot.slane %v382, 1
        %vm384 = vcmp.lt.s32.totalorder %v382, %v383
        %v385 = vsel %vm384, %v382, %v383
        %vm386 = vcmp.eq.s32.totalorder %v215, %v385
        %vm387 = vcmp.eq.s32.totalorder %v216, %v385
        %v388 = vsel %vm386, inf, %v361
        %v389 = vsel %vm387, inf, %v362
        %v390 = vadd.f32 %v363, %v370
        %v391 = vmin.f32 %v388, %v389
        %v392 = vrot.slane %v391, 4
        %v393 = vmin.f32 %v391, %v392
        %v394 = vrot.slane %v393, 2
        %v395 = vmin.f32 %v393, %v394
        %v396 = vrot.slane %v395, 1
        %v397 = vmin.f32 %v395, %v396
        %vm398 = vcmp.eq.f32.partialorder %v388, %v397
        %vm399 = vcmp.eq.f32.partialorder %v389, %v397
        %v400 = vsel %vm398, %v215, 16
        %v401 = vsel %vm399, %v216, 16
        %vm402 = vcmp.lt.s32.totalorder %v400, %v401
        %v403 = vsel %vm402, %v400, %v401
        %v404 = vrot.slane %v403, 4
        %vm405 = vcmp.lt.s32.totalorder %v403, %v404
        %v406 = vsel %vm405, %v403, %v404
        %v407 = vrot.slane %v406, 2
        %vm408 = vcmp.lt.s32.totalorder %v406, %v407
        %v409 = vsel %vm408, %v406, %v407
        %v410 = vrot.slane %v409, 1
        %vm411 = vcmp.lt.s32.totalorder %v409, %v410
        %v412 = vsel %vm411, %v409, %v410
        %vm413 = vcmp.eq.s32.totalorder %v215, %v412
        %vm414 = vcmp.eq.s32.totalorder %v216, %v412
        %v415 = vsel %vm413, inf, %v388
        %v416 = vsel %vm414, inf, %v389
        %v417 = vadd.f32 %v390, %v397
        %v418 = vmin.f32 %v415, %v416
        %v419 = vrot.slane %v418, 4
        %v420 = vmin.f32 %v418, %v419
        %v421 = vrot.slane %v420, 2
        %v422 = vmin.f32 %v420, %v421
        %v423 = vrot.slane %v422, 1
        %v424 = vmin.f32 %v422, %v423
        %vm425 = vcmp.eq.f32.partialorder %v415, %v424
        %vm426 = vcmp.eq.f32.partialorder %v416, %v424
        %v427 = vsel %vm425, %v215, 16
        %v428 = vsel %vm426, %v216, 16
        %vm429 = vcmp.lt.s32.totalorder %v427, %v428
        %v430 = vsel %vm429, %v427, %v428
        %v431 = vrot.slane %v430, 4
        %vm432 = vcmp.lt.s32.totalorder %v430, %v431
        %v433 = vsel %vm432, %v430, %v431
        %v434 = vrot.slane %v433, 2
        %vm435 = vcmp.lt.s32.totalorder %v433, %v434
        %v436 = vsel %vm435, %v433, %v434
        %v437 = vrot.slane %v436, 1
        %vm438 = vcmp.lt.s32.totalorder %v436, %v437
        %v439 = vsel %vm438, %v436, %v437
        %vm440 = vcmp.eq.s32.totalorder %v215, %v439
        %vm441 = vcmp.eq.s32.totalorder %v216, %v439
        %v442 = vsel %vm440, inf, %v415
        %v443 = vsel %vm441, inf, %v416
        %v444 = vadd.f32 %v417, %v424
        %v445 = vmin.f32 %v442, %v443
        %v446 = vrot.slane %v445, 4
        %v447 = vmin.f32 %v445, %v446
        %v448 = vrot.slane %v447, 2
        %v449 = vmin.f32 %v447, %v448
        %v450 = vrot.slane %v449, 1
        %v451 = vmin.f32 %v449, %v450
        %vm452 = vcmp.eq.f32.partialorder %v442, %v451
        %vm453 = vcmp.eq.f32.partialorder %v443, %v451
        %v454 = vsel %vm452, %v215, 16
        %v455 = vsel %vm453, %v216, 16
        %vm456 = vcmp.lt.s32.totalorder %v454, %v455
        %v457 = vsel %vm456, %v454, %v455
        %v458 = vrot.slane %v457, 4
        %vm459 = vcmp.lt.s32.totalorder %v457, %v458
        %v460 = vsel %vm459, %v457, %v458
        %v461 = vrot.slane %v460, 2
        %vm462 = vcmp.lt.s32.totalorder %v460, %v461
        %v463 = vsel %vm462, %v460, %v461
        %v464 = vrot.slane %v463, 1
        %vm465 = vcmp.lt.s32.totalorder %v463, %v464
        %v466 = vsel %vm465, %v463, %v464
        %vm467 = vcmp.eq.s32.totalorder %v215, %v466
        %vm468 = vcmp.eq.s32.totalorder %v216, %v466
        %v469 = vsel %vm467, inf, %v442
        %v470 = vsel %vm468, inf, %v443
        %v471 = vadd.f32 %v444, %v451
        %v472 = vmin.f32 %v469, %v470
        %v473 = vrot.slane %v472, 4
        %v474 = vmin.f32 %v472, %v473
        %v475 = vrot.slane %v474, 2
        %v476 = vmin.f32 %v474, %v475
        %v477 = vrot.slane %v476, 1
        %v478 = vmin.f32 %v476, %v477
        %v479 = vadd.f32 %v471, %v478
        %v480 = vsub.f32 %v336, %v479
        %v481 = vmul.f32 %v480, 0.1
        %482 = vst [vmem:[%s188] sm:$0x1] %v481
        %s483 = sand.u32 %s95, 1
        %s484 = scalar_lea.sflag [#allocation3], %s483
        %s485 = sand.u32 %s95, 1
        %s486 = scalar_lea.vmem [#allocation2], %s485
        %p487 = scmp.lt.s32.totalorder %s19, 1
        %s488 = scalar_select %p487, %s19, 1
        %s489 = smul.addr %s488, 2
        %s490 = smul.addr %s489, 8
        %s491 = scalar_lea.vmem %s4, %s490
        // Predicated region
        $region33: #{intra_adr_forward.1} parent=31 // pred_check
          %p492 = pneg %p105
        $region34: #{intra_adr_forward.1} parent=31 // pred_check_branch
          %494 = sbr.rel (%p492) target = $region36
        $region35: #{intra_adr_forward.1} parent=31 // pred_region
          %496 = vsyncadd %s484, 0
          %s497 = scalar_lea.hbm %s3, %s19
          %s499 = sshll.u32 %s486, 4
          %s500 = int_to_ptr.vmem [resolvable:$true] %s499
          %s501 = sshll.u32 %s497, 4
          %s502 = int_to_ptr.hbm [resolvable:$true] %s501
          %504 = dma.vmem_to_hbm [thread:$0]  %s500, 16, %s502, %s484
        $region36: #{intra_adr_forward.1} parent=31 // pred_fallthru
          _
        // Predicated region
        $region37: #{intra_adr_forward.1} parent=31 // pred_check
          %p505 = pneg %p131
        $region38: #{intra_adr_forward.1} parent=31 // pred_check_branch
          %507 = sbr.rel (%p505) target = $region40
        $region39: #{intra_adr_forward.1} parent=31 // pred_region
          _
        $region40: #{intra_adr_forward.1} parent=31 // pred_fallthru
          _
      $region32: #{intra_adr_forward.1} parent=5 // pred_fallthru
        _
      %p508 = scmp.le.s32.totalorder 2, %s14
      // Predicated region
      $region41: #{intra_adr_forward.1} parent=5 // pred_check
        %p509 = pneg %p508
      $region42: #{intra_adr_forward.1} parent=5 // pred_check_branch
        %511 = sbr.rel (%p509) target = $region44
      $region43: #{intra_adr_forward.1} parent=5 // pred_region
        %s512 = ssub.s32 %s14, 2
        // Predicated region
        $region45: #{intra_adr_forward.1} parent=43 // pred_check
          %p513 = pneg %p111
        $region46: #{intra_adr_forward.1} parent=43 // pred_check_branch
          %515 = sbr.rel (%p513) target = $region48
        $region47: #{intra_adr_forward.1} parent=43 // pred_region
          %s516 = sand.u32 %s96, 1
          %s517 = scalar_lea.sflag [#allocation3], %s516
          %s518 = sand.u32 %s96, 1
          %s519 = scalar_lea.vmem [#allocation2], %s518
          %521 = dma.done %s517, 16
        $region48: #{intra_adr_forward.1} parent=43 // pred_fallthru
          _
        // Predicated region
        $region49: #{intra_adr_forward.1} parent=43 // pred_check
          %p522 = pneg %p137
        $region50: #{intra_adr_forward.1} parent=43 // pred_check_branch
          %524 = sbr.rel (%p522) target = $region52
        $region51: #{intra_adr_forward.1} parent=43 // pred_region
          %p525 = scmp.lt.s32.totalorder %s20, 1
          %s526 = scalar_select %p525, %s20, 1
          %s527 = smul.addr %s526, 2
          %s528 = smul.addr %s527, 8
          %s529 = scalar_lea.vmem %s4, %s528
        $region52: #{intra_adr_forward.1} parent=43 // pred_fallthru
          _
      $region44: #{intra_adr_forward.1} parent=5 // pred_fallthru
        _
    $region6: #{intra_adr_forward.1} parent=1 // loop_footer
      %s18 = sadd.s32 1, %s14
    $region7: #{intra_adr_forward.1} parent=1 // loop_footer_branch
      %13 = sbr.rel target = $region3
    $region8: #{intra_adr_forward.1} parent=1 // loop_exit
      _
    %530 = vsyncpa [#allocation3], 1
    %s531 = scalar_lea.sflag [#allocation3], 1
    %532 = vsyncpa %s531, 1

</llo_original>
